<compile_context>
chip_gen: v7x
topology: tpu7x:2x2x1
jax: 0.10.0
libtpu: 0.0.40
codegen_flags: <defaults>
</compile_context>

<pallas_src>
import jax
import jax.numpy as jnp
from jax.experimental import pallas as pl
from jax.experimental.pallas import tpu as pltpu

_LANE = 128      # lane width of a vreg (last dim)
_SUBLANE = 8     # sublane count of a vreg (second-to-last dim)


def _cdiv(a, b):
    return -(-a // b)


def _round_up(x, m):
    return _cdiv(x, m) * m


def dqn_kernel(x_ref, w1_ref, b1_ref, w2_ref, b2_ref, out_ref):
    # x:  [tb, d_in]    w1: [d_in, h_p]   b1: [1, h_p]
    # w2: [h_p, d_out]  b2: [1, d_out]    out: [tb, d_out]
    x = x_ref[...]
    h = jnp.dot(x, w1_ref[...], preferred_element_type=jnp.float32) + b1_ref[...]
    h = jnp.maximum(h, 0.0)  # ReLU, f32 on the VPU (safe on v5e too)
    y = jnp.dot(h, w2_ref[...], preferred_element_type=jnp.float32) + b2_ref[...]
    out_ref[...] = y.astype(out_ref.dtype)


def prepare_params(w1, b1, w2, b2):
    """One-time parameter prep (run once, outside the per-step hot path).

    Casts to f32 and pads ONLY the hidden dimension to a lane multiple.
    Padded hidden lanes of w1/b1 are zero and the matching padded rows of w2
    are zero, so they contribute exactly 0 to the output.  d_in and d_out are
    left unpadded so activation / output DMA traffic is not inflated.
    Weights are stored [in, out] (transpose of torch's nn.Linear layout).
    """
    d_in, h = w1.shape
    h2, d_out = w2.shape
    assert h == h2
    h_p = _round_up(h, _LANE)
    f32 = jnp.float32
    w1_p = jnp.pad(w1.astype(f32), ((0, 0), (0, h_p - h)))
    b1_p = jnp.pad(b1.astype(f32).reshape(1, h), ((0, 0), (0, h_p - h)))
    w2_p = jnp.pad(w2.astype(f32), ((0, h_p - h), (0, 0)))
    b2_p = b2.astype(f32).reshape(1, d_out)
    return w1_p, b1_p, w2_p, b2_p


def dqn_forward(x, w1, b1, w2, b2, *, batch_tile=512, min_grid_steps=1):
    """Fused DQN forward.  Params must come from prepare_params().

    x: [B, d_in] -> [B, d_out].
    min_grid_steps=2 is useful on v7x (2 TensorCores) so the batch-parallel
    grid axis actually has work for both cores; leave at 1 on v5e/v6e.
    """
    B, d_in = x.shape
    d_in_w, h_p = w1.shape
    h_p2, d_out = w2.shape
    assert d_in == d_in_w and h_p == h_p2
    x = x.astype(jnp.float32)

    # Balanced batch tiling: never pad B up to a hard multiple of batch_tile.
    num_tiles = max(min_grid_steps, _cdiv(B, batch_tile))
    num_tiles = min(num_tiles, max(1, _cdiv(B, _SUBLANE)))  # no empty tiles
    tb = _round_up(_cdiv(B, num_tiles), _SUBLANE)
    grid = (_cdiv(B, tb),)

    # Advisory cost estimate from the true dims (not padded batch/lanes).
    flops = 2 * B * (d_in * h_p + h_p * d_out)
    bytes_accessed = 4 * (B * d_in + d_in * h_p + h_p
                          + h_p * d_out + d_out + B * d_out)

    return pl.pallas_call(
        dqn_kernel,
        out_shape=jax.ShapeDtypeStruct((B, d_out), jnp.float32),
        grid_spec=pltpu.PrefetchScalarGridSpec(
            num_scalar_prefetch=0,
            grid=grid,
            in_specs=[
                # Activations stream per grid step; last dim = full array dim.
                pl.BlockSpec((tb, d_in), lambda i: (i, 0)),
                # Weights/biases: constant index_map -> loaded once, VMEM-resident.
                pl.BlockSpec((d_in, h_p), lambda i: (0, 0)),
                pl.BlockSpec((1, h_p), lambda i: (0, 0)),
                pl.BlockSpec((h_p, d_out), lambda i: (0, 0)),
                pl.BlockSpec((1, d_out), lambda i: (0, 0)),
            ],
            out_specs=pl.BlockSpec((tb, d_out), lambda i: (i, 0)),
        ),
        compiler_params=pltpu.CompilerParams(
            # Independent batch tiles -> sharded across both v7x TensorCores
            # when the grid has >= 2 steps.
            dimension_semantics=("parallel",),
        ),
        cost_estimate=pl.CostEstimate(
            flops=flops, transcendentals=0, bytes_accessed=bytes_accessed),
    )(x, w1, b1, w2, b2)


def init_params(key, input_dim, hidden_dim, output_dim):
    # Mimics PyTorch nn.Linear's U(-1/sqrt(fan_in), 1/sqrt(fan_in)) init.
    k1, k2, k3, k4 = jax.random.split(key, 4)
    lim1 = 1.0 / (input_dim ** 0.5)
    lim2 = 1.0 / (hidden_dim ** 0.5)
    # Stored pre-transposed: [in, out]
    w1 = jax.random.uniform(k1, (input_dim, hidden_dim), jnp.float32, -lim1, lim1)
    b1 = jax.random.uniform(k2, (1, hidden_dim), jnp.float32, -lim1, lim1)
    w2 = jax.random.uniform(k3, (hidden_dim, output_dim), jnp.float32, -lim2, lim2)
    b2 = jax.random.uniform(k4, (1, output_dim), jnp.float32, -lim2, lim2)
    return w1, b1, w2, b2


def _reference(x, w1, b1, w2, b2):
    return jnp.maximum(x @ w1 + b1, 0.0) @ w2 + b2


# TODO(synk): DQN.save() (torch.save of the state_dict) is host-side file I/O
# with no Pallas equivalent; only the forward pass is implemented here.

if __name__ == "__main__":
    # Snake DQN-style sizes: 16 state features, 32 hidden units, 4 actions.
    INPUT_DIM, HIDDEN_DIM, OUTPUT_DIM = 16, 32, 4

    key = jax.random.PRNGKey(0)
    kx, kp, kx2 = jax.random.split(key, 3)
    w1, b1, w2, b2 = init_params(kp, INPUT_DIM, HIDDEN_DIM, OUTPUT_DIM)
    params = prepare_params(w1, b1, w2, b2)   # done once, off the hot path

    # 1) Small-batch inference path (single grid step, unpadded activations).
    B = 8
    x = jax.random.normal(kx, (B, INPUT_DIM), jnp.float32)
    out = jax.block_until_ready(dqn_forward(x, *params))
    ref = _reference(x, w1, b1, w2, b2)
    assert out.shape == (B, OUTPUT_DIM)
    assert jnp.allclose(out, ref, atol=1e-5, rtol=1e-5)

    # 2) Multi-step grid + ragged last batch tile: exercises weight residency
    #    across grid steps and Pallas' handling of B not divisible by tb.
    B2 = 300
    x2 = jax.random.normal(kx2, (B2, INPUT_DIM), jnp.float32)
    out2 = jax.block_until_ready(dqn_forward(x2, *params, batch_tile=128))
    ref2 = _reference(x2, w1, b1, w2, b2)
    assert out2.shape == (B2, OUTPUT_DIM)
    assert jnp.allclose(out2, ref2, atol=1e-5, rtol=1e-5)

    print("KERNEL_OK")
</pallas_src>

<mosaic_0001>
module attributes {stable_mosaic.version = 11 : i64} {
  func.func @dqn_kernel(%arg0: i32, %arg1: memref<8x16xf32, #tpu.memory_space<vmem>>, %arg2: memref<16x128xf32, #tpu.memory_space<vmem>>, %arg3: memref<1x128xf32, #tpu.memory_space<vmem>>, %arg4: memref<128x4xf32, #tpu.memory_space<vmem>>, %arg5: memref<1x4xf32, #tpu.memory_space<vmem>>, %arg6: memref<8x4xf32, #tpu.memory_space<vmem>>) attributes {dimension_semantics = [#tpu.dimension_semantics<parallel>], iteration_bounds = array<i64: 1>, scalar_prefetch = 0 : i64, scratch_operands = 0 : i64, tpu.core_type = #tpu.core_type<tc>, window_params = [{transform_indices = @transform_0, window_bounds = array<i64: 8, 16>}, {pipeline_mode = #tpu.pipeline_mode<synchronous>, transform_indices = @transform_1, window_bounds = array<i64: 16, 128>}, {pipeline_mode = #tpu.pipeline_mode<synchronous>, transform_indices = @transform_2, window_bounds = array<i64: 1, 128>}, {pipeline_mode = #tpu.pipeline_mode<synchronous>, transform_indices = @transform_3, window_bounds = array<i64: 128, 4>}, {pipeline_mode = #tpu.pipeline_mode<synchronous>, transform_indices = @transform_4, window_bounds = array<i64: 1, 4>}, {transform_indices = @transform_5, window_bounds = array<i64: 8, 4>}]} {
    %c0 = arith.constant 0 : index
    %c0_0 = arith.constant 0 : index
    %0 = vector.load %arg1[%c0, %c0_0] : memref<8x16xf32, #tpu.memory_space<vmem>>, vector<8x16xf32>
    %c0_1 = arith.constant 0 : index
    %c0_2 = arith.constant 0 : index
    %1 = vector.load %arg2[%c0_1, %c0_2] : memref<16x128xf32, #tpu.memory_space<vmem>>, vector<16x128xf32>
    %cst = arith.constant dense<0.000000e+00> : vector<8x128xf32>
    %2 = tpu.matmul %0, %1, %cst {dimension_numbers = #tpu.dot_dimension_numbers<[1], [0], [0], [1], [0, 0, 1, 1], [], []>} : vector<8x16xf32>, vector<16x128xf32>, vector<8x128xf32> -> vector<8x128xf32>
    %c0_3 = arith.constant 0 : index
    %c0_4 = arith.constant 0 : index
    %3 = vector.load %arg3[%c0_3, %c0_4] : memref<1x128xf32, #tpu.memory_space<vmem>>, vector<1x128xf32>
    %4 = vector.broadcast %3 : vector<1x128xf32> to vector<8x128xf32>
    %5 = arith.addf %2, %4 : vector<8x128xf32>
    %cst_5 = arith.constant 0.000000e+00 : f32
    %6 = vector.broadcast %cst_5 : f32 to vector<8x128xf32>
    %7 = arith.maximumf %5, %6 : vector<8x128xf32>
    %c0_6 = arith.constant 0 : index
    %c0_7 = arith.constant 0 : index
    %8 = vector.load %arg4[%c0_6, %c0_7] : memref<128x4xf32, #tpu.memory_space<vmem>>, vector<128x4xf32>
    %cst_8 = arith.constant dense<0.000000e+00> : vector<8x4xf32>
    %9 = tpu.matmul %7, %8, %cst_8 {dimension_numbers = #tpu.dot_dimension_numbers<[1], [0], [0], [1], [0, 0, 1, 1], [], []>} : vector<8x128xf32>, vector<128x4xf32>, vector<8x4xf32> -> vector<8x4xf32>
    %c0_9 = arith.constant 0 : index
    %c0_10 = arith.constant 0 : index
    %10 = vector.load %arg5[%c0_9, %c0_10] : memref<1x4xf32, #tpu.memory_space<vmem>>, vector<1x4xf32>
    %11 = vector.broadcast %10 : vector<1x4xf32> to vector<8x4xf32>
    %12 = arith.addf %9, %11 : vector<8x4xf32>
    %c0_11 = arith.constant 0 : index
    %c0_12 = arith.constant 0 : index
    %13 = vector.load %arg6[%c0_11, %c0_12] : memref<8x4xf32, #tpu.memory_space<vmem>>, vector<8x4xf32>
    tpu.vector_store %arg6[%c0_11, %c0_12], %12 {strides = array<i32>} : memref<8x4xf32, #tpu.memory_space<vmem>>, vector<8x4xf32>,
    return
  }
  func.func @transform_0(%arg0: i32) -> (i32, i32) {
    %c0_i32 = arith.constant 0 : i32
    %c0_i32_0 = arith.constant 0 : i32
    return %arg0, %c0_i32 : i32, i32
  }
  func.func @transform_1(%arg0: i32) -> (i32, i32) {
    %c0_i32 = arith.constant 0 : i32
    %c0_i32_0 = arith.constant 0 : i32
    %c0_i32_1 = arith.constant 0 : i32
    return %c0_i32, %c0_i32_0 : i32, i32
  }
  func.func @transform_2(%arg0: i32) -> (i32, i32) {
    %c0_i32 = arith.constant 0 : i32
    %c0_i32_0 = arith.constant 0 : i32
    %c0_i32_1 = arith.constant 0 : i32
    return %c0_i32, %c0_i32_0 : i32, i32
  }
  func.func @transform_3(%arg0: i32) -> (i32, i32) {
    %c0_i32 = arith.constant 0 : i32
    %c0_i32_0 = arith.constant 0 : i32
    %c0_i32_1 = arith.constant 0 : i32
    return %c0_i32, %c0_i32_0 : i32, i32
  }
  func.func @transform_4(%arg0: i32) -> (i32, i32) {
    %c0_i32 = arith.constant 0 : i32
    %c0_i32_0 = arith.constant 0 : i32
    %c0_i32_1 = arith.constant 0 : i32
    return %c0_i32, %c0_i32_0 : i32, i32
  }
  func.func @transform_5(%arg0: i32) -> (i32, i32) {
    %c0_i32 = arith.constant 0 : i32
    %c0_i32_0 = arith.constant 0 : i32
    return %arg0, %c0_i32 : i32, i32
  }
}

</mosaic_0001>

<llo_original>
// kernel: tpu_custom_call.1
$region0: #{tpu_custom_call.1}
  #allocation0 [shape = 'u32[]', space=smem, size = 0x4, offset = 0x4, fixed_abs, tag = 'smem constant byte address 0x4 - core index']
  #allocation1 [shape = 'u32[144,128]{1,0:T(1,128)}', space=vmem, size = 0x12000, scoped, tag = 'internal scratch']
  %s0 = inlined_call_operand.vmem [shape: f32[8,16], index: 0, kind: input, shape index: {}]
  %s1 = inlined_call_operand.vmem [shape: f32[16,128], index: 1, kind: input, shape index: {}]
  %s2 = inlined_call_operand.vmem [shape: f32[1,128], index: 2, kind: input, shape index: {}]
  %s3 = inlined_call_operand.vmem [shape: f32[128,4], index: 3, kind: input, shape index: {}]
  %s4 = inlined_call_operand.vmem [shape: f32[1,4], index: 4, kind: input, shape index: {}]
  %s5 = inlined_call_operand.vmem [shape: f32[8,4], index: 5, kind: output, shape index: {}]
  %s6 = sld [smem:[#allocation0]]
  $region30: #{tpu_custom_call.1} parent=0
    _
  %s8 = ssub.s32 1, %s6
  %s9 = scalar_select 0, %s8, %s6
  // Predicated region
  $region2: #{tpu_custom_call.1} parent=0 // pred_check
    _
  $region3: #{tpu_custom_call.1} parent=0 // pred_check_branch
    %11 = sbr.rel (0) target = $region5
  $region4: #{tpu_custom_call.1} parent=0 // pred_region
    _
  $region5: #{tpu_custom_call.1} parent=0 // pred_fallthru
    _
  // Predicated region
  $region6: #{tpu_custom_call.1} parent=0 // pred_check
    _
  $region7: #{tpu_custom_call.1} parent=0 // pred_check_branch
    %13 = sbr.rel (0) target = $region9
  $region8: #{tpu_custom_call.1} parent=0 // pred_region
    _
  $region9: #{tpu_custom_call.1} parent=0 // pred_fallthru
    _
  // Predicated region
  $region10: #{tpu_custom_call.1} parent=0 // pred_check
    _
  $region11: #{tpu_custom_call.1} parent=0 // pred_check_branch
    %15 = sbr.rel (0) target = $region13
  $region12: #{tpu_custom_call.1} parent=0 // pred_region
    _
  $region13: #{tpu_custom_call.1} parent=0 // pred_fallthru
    _
  // Predicated region
  $region14: #{tpu_custom_call.1} parent=0 // pred_check
    _
  $region15: #{tpu_custom_call.1} parent=0 // pred_check_branch
    %17 = sbr.rel (0) target = $region17
  $region16: #{tpu_custom_call.1} parent=0 // pred_region
    _
  $region17: #{tpu_custom_call.1} parent=0 // pred_fallthru
    _
  // Predicated region
  $region18: #{tpu_custom_call.1} parent=0 // pred_check
    _
  $region19: #{tpu_custom_call.1} parent=0 // pred_check_branch
    %19 = sbr.rel (0) target = $region21
  $region20: #{tpu_custom_call.1} parent=0 // pred_region
    _
  $region21: #{tpu_custom_call.1} parent=0 // pred_fallthru
    _
  %v20 = vld [vmem:[%s0] sm:$0xff]
  %v21 = vld [vmem:[%s1] sm:$0xff]
  %v22 = vld [vmem:[%s1 + $0x8] sm:$0xff]
  %v23 = vld [vmem:[%s2] sm:$0x1]
  %v25 = vlaneseq
  %v26 = vshrl.u32 %v25, 7
  %v27 = vsub.s32 0, %v26
  %v28 = vrot.slane %v23, %v27
  %vm30 = vcmask 130048
  %v32 = vsel %vm30, %v20, 0
  %34 = vmatprep.subr.mxu0 0.0
  %35 = vmatpush1.msra.mxu0 %v21
  %36 = vmatprep.subr.mxu0 0.0
  %37 = vmatpush1.msra.mxu0 %v22
  %38 = vmatprep.subr.mxu0 0.0
  %39 = vmatpush1.msra.mxu0 0.0
  %40 = vmatprep.subr.mxu0 0.0
  %41 = vmatpush1.msra.mxu0 0.0
  %42 = vmatprep.subr.mxu0 0.0
  %43 = vmatpush1.msra.mxu0 0.0
  %44 = vmatprep.subr.mxu0 0.0
  %45 = vmatpush1.msra.mxu0 0.0
  %46 = vmatprep.subr.mxu0 0.0
  %47 = vmatpush1.msra.mxu0 0.0
  %48 = vmatprep.subr.mxu0 0.0
  %49 = vmatpush1.msra.mxu0 0.0
  %50 = vmatprep.subr.mxu0 0.0
  %51 = vmatpush1.msra.mxu0 0.0
  %52 = vmatprep.subr.mxu0 0.0
  %53 = vmatpush1.msra.mxu0 0.0
  %54 = vmatprep.subr.mxu0 0.0
  %55 = vmatpush1.msra.mxu0 0.0
  %56 = vmatprep.subr.mxu0 0.0
  %57 = vmatpush1.msra.mxu0 0.0
  %58 = vmatprep.subr.mxu0 0.0
  %59 = vmatpush1.msra.mxu0 0.0
  %60 = vmatprep.subr.mxu0 0.0
  %61 = vmatpush1.msra.mxu0 0.0
  %62 = vmatprep.subr.mxu0 0.0
  %63 = vmatpush1.msra.mxu0 0.0
  %64 = vmatprep.subr.mxu0 0.0
  %65 = vmatpush1.msra.mxu0 0.0
  %66 = vmatprep.subr.mxu0 0.0
  %67 = vmatpush1.msra.mxu0 0.0
  %68 = vmatprep.subr.mxu0 0.0
  %69 = vmatpush1.msra.mxu0 0.0
  %70 = vmatprep.subr.mxu0 0.0
  %71 = vmatpush1.msra.mxu0 0.0
  %72 = vmatprep.subr.mxu0 0.0
  %73 = vmatpush1.msra.mxu0 0.0
  %74 = vmatprep.subr.mxu0 0.0
  %75 = vmatpush1.msra.mxu0 0.0
  %76 = vmatprep.subr.mxu0 0.0
  %77 = vmatpush1.msra.mxu0 0.0
  %78 = vmatprep.subr.mxu0 0.0
  %79 = vmatpush1.msra.mxu0 0.0
  %80 = vmatprep.subr.mxu0 0.0
  %81 = vmatpush1.msra.mxu0 0.0
  %82 = vmatprep.subr.mxu0 0.0
  %83 = vmatpush1.msra.mxu0 0.0
  %84 = vmatprep.subr.mxu0 0.0
  %85 = vmatpush1.msra.mxu0 0.0
  %86 = vmatprep.subr.mxu0 0.0
  %87 = vmatpush1.msra.mxu0 0.0
  %88 = vmatprep.subr.mxu0 0.0
  %89 = vmatpush1.msra.mxu0 0.0
  %90 = vmatprep.subr.mxu0 0.0
  %91 = vmatpush1.msra.mxu0 0.0
  %92 = vmatprep.subr.mxu0 0.0
  %93 = vmatpush1.msra.mxu0 0.0
  %94 = vmatprep.subr.mxu0 0.0
  %95 = vmatpush1.msra.mxu0 0.0
  %96 = vmatprep.subr.mxu0 0.0
  %97 = vmatpush1.msra.mxu0 0.0
  %98 = vmatprep.mubr.f32.mxu0 0.0
  %99 = vmatmul.mubr.f32.gmra.mrb[0].mxu0 %v32
  %v100 = vpop.f32.mrb[0].mxu0
  %v101 = vadd.f32 %v28, %v100
  %v102 = vpop.f32.mrb[0].mxu0
  %103 = vdwg.mxu0
  %v104 = vmax.f32 %v101, 0.0
  %v105 = vld [vmem:[%s3] sm:$0xff]
  %v106 = vld [vmem:[%s3 + $0x8] sm:$0xff]
  %v107 = vld [vmem:[%s3 + $0x10] sm:$0xff]
  %v108 = vld [vmem:[%s3 + $0x18] sm:$0xff]
  %v109 = vld [vmem:[%s3 + $0x20] sm:$0xff]
  %v110 = vld [vmem:[%s3 + $0x28] sm:$0xff]
  %v111 = vld [vmem:[%s3 + $0x30] sm:$0xff]
  %v112 = vld [vmem:[%s3 + $0x38] sm:$0xff]
  %v113 = vld [vmem:[%s3 + $0x40] sm:$0xff]
  %v114 = vld [vmem:[%s3 + $0x48] sm:$0xff]
  %v115 = vld [vmem:[%s3 + $0x50] sm:$0xff]
  %v116 = vld [vmem:[%s3 + $0x58] sm:$0xff]
  %v117 = vld [vmem:[%s3 + $0x60] sm:$0xff]
  %v118 = vld [vmem:[%s3 + $0x68] sm:$0xff]
  %v119 = vld [vmem:[%s3 + $0x70] sm:$0xff]
  %v120 = vld [vmem:[%s3 + $0x78] sm:$0xff]
  %v121 = vld [vmem:[%s4] sm:$0x1]
  %v123 = vlaneseq
  %v124 = vshrl.u32 %v123, 7
  %v125 = vsub.s32 0, %v124
  %v126 = vrot.slane %v121, %v125
  %128 = vmatprep.subr.mxu0 0.0
  %129 = vmatpush1.msra.mxu0 %v105
  %130 = vmatprep.subr.mxu0 0.0
  %131 = vmatpush1.msra.mxu0 %v106
  %132 = vmatprep.subr.mxu0 0.0
  %133 = vmatpush1.msra.mxu0 %v107
  %134 = vmatprep.subr.mxu0 0.0
  %135 = vmatpush1.msra.mxu0 %v108
  %136 = vmatprep.subr.mxu0 0.0
  %137 = vmatpush1.msra.mxu0 %v109
  %138 = vmatprep.subr.mxu0 0.0
  %139 = vmatpush1.msra.mxu0 %v110
  %140 = vmatprep.subr.mxu0 0.0
  %141 = vmatpush1.msra.mxu0 %v111
  %142 = vmatprep.subr.mxu0 0.0
  %143 = vmatpush1.msra.mxu0 %v112
  %144 = vmatprep.subr.mxu0 0.0
  %145 = vmatpush1.msra.mxu0 %v113
  %146 = vmatprep.subr.mxu0 0.0
  %147 = vmatpush1.msra.mxu0 %v114
  %148 = vmatprep.subr.mxu0 0.0
  %149 = vmatpush1.msra.mxu0 %v115
  %150 = vmatprep.subr.mxu0 0.0
  %151 = vmatpush1.msra.mxu0 %v116
  %152 = vmatprep.subr.mxu0 0.0
  %153 = vmatpush1.msra.mxu0 %v117
  %154 = vmatprep.subr.mxu0 0.0
  %155 = vmatpush1.msra.mxu0 %v118
  %156 = vmatprep.subr.mxu0 0.0
  %157 = vmatpush1.msra.mxu0 %v119
  %158 = vmatprep.subr.mxu0 0.0
  %159 = vmatpush1.msra.mxu0 %v120
  %160 = vmatprep.subr.mxu0 0.0
  %161 = vmatpush1.msra.mxu0 0.0
  %162 = vmatprep.subr.mxu0 0.0
  %163 = vmatpush1.msra.mxu0 0.0
  %164 = vmatprep.subr.mxu0 0.0
  %165 = vmatpush1.msra.mxu0 0.0
  %166 = vmatprep.subr.mxu0 0.0
  %167 = vmatpush1.msra.mxu0 0.0
  %168 = vmatprep.subr.mxu0 0.0
  %169 = vmatpush1.msra.mxu0 0.0
  %170 = vmatprep.subr.mxu0 0.0
  %171 = vmatpush1.msra.mxu0 0.0
  %172 = vmatprep.subr.mxu0 0.0
  %173 = vmatpush1.msra.mxu0 0.0
  %174 = vmatprep.subr.mxu0 0.0
  %175 = vmatpush1.msra.mxu0 0.0
  %176 = vmatprep.subr.mxu0 0.0
  %177 = vmatpush1.msra.mxu0 0.0
  %178 = vmatprep.subr.mxu0 0.0
  %179 = vmatpush1.msra.mxu0 0.0
  %180 = vmatprep.subr.mxu0 0.0
  %181 = vmatpush1.msra.mxu0 0.0
  %182 = vmatprep.subr.mxu0 0.0
  %183 = vmatpush1.msra.mxu0 0.0
  %184 = vmatprep.subr.mxu0 0.0
  %185 = vmatpush1.msra.mxu0 0.0
  %186 = vmatprep.subr.mxu0 0.0
  %187 = vmatpush1.msra.mxu0 0.0
  %188 = vmatprep.subr.mxu0 0.0
  %189 = vmatpush1.msra.mxu0 0.0
  %190 = vmatprep.subr.mxu0 0.0
  %191 = vmatpush1.msra.mxu0 0.0
  %192 = vmatprep.mubr.f32.mxu0 0.0
  %193 = vmatmul.mubr.f32.gmra.mrb[0].mxu0 %v104
  %v194 = vpop.f32.mrb[0].mxu0
  %v195 = vadd.f32 %v126, %v194
  %v196 = vpop.f32.mrb[0].mxu0
  %197 = vdwg.mxu0
  %vm198 = vcmask 31744
  %199 = vst.msk [vmem:[%s5] sm:$0xff] %vm198, %v195
  // Predicated region
  $region22: #{tpu_custom_call.1} parent=0 // pred_check
    _
  $region23: #{tpu_custom_call.1} parent=0 // pred_check_branch
    %201 = sbr.rel (0) target = $region25
  $region24: #{tpu_custom_call.1} parent=0 // pred_region
    _
  $region25: #{tpu_custom_call.1} parent=0 // pred_fallthru
    _
  // Predicated region
  $region26: #{tpu_custom_call.1} parent=0 // pred_check
    _
  $region27: #{tpu_custom_call.1} parent=0 // pred_check_branch
    %203 = sbr.rel (0) target = $region29
  $region28: #{tpu_custom_call.1} parent=0 // pred_region
    _
  $region29: #{tpu_custom_call.1} parent=0 // pred_fallthru
    _

</llo_original>
